<compile_context>
chip_gen: v6e
topology: v6e:2x2x1
jax: 0.10.0
libtpu: 0.0.40
codegen_flags: <defaults>
</compile_context>

<pallas_src>
import functools

import jax
import jax.numpy as jnp
from jax.experimental import pallas as pl
from jax.experimental.pallas import tpu as pltpu


def _round_up(n, m):
    return ((n + m - 1) // m) * m


def _lane_pad(n):
    # VMEM rows are padded to a multiple of 128 lanes.
    return _round_up(max(int(n), 128), 128)


def _para_sigmoid_kernel(x_ref, w_ref, b_ref, o_ref, *, fold, feat):
    # x_ref: (TB, fold*feat)  input tile (caller dtype); `fold` logical rows per VMEM row
    # w_ref: (1, fold*feat)   f32 weight row tiled `fold` times (constant -> stays resident)
    # b_ref: (1,)             SMEM scalar bias
    # o_ref: (TB, fold)       output tile (one sigmoid per logical row)
    #
    # Matvec stays on the VPU (multiply) + XLU (lane reduce); an MXU matmul with a
    # handful of output columns would be the saturating unit for this mem-bound kernel.
    p = x_ref[...].astype(jnp.float32) * w_ref[...]
    if fold == 1:
        y = jnp.sum(p, axis=-1, keepdims=True)
    else:
        # Segmented lane reduction: one partial sum per packed logical row.
        y = jnp.concatenate(
            [jnp.sum(p[:, j * feat:(j + 1) * feat], axis=-1, keepdims=True)
             for j in range(fold)],
            axis=-1)
    y = y + b_ref[0]
    # Exact sigmoid: exp lands on the EUP, the divide is exact (approx recip was the
    # source of the previous accuracy failure and EUP is nowhere near the bottleneck).
    o_ref[...] = (1.0 / (1.0 + jnp.exp(-y))).astype(o_ref.dtype)


def para_sigmoid(x, weight, bias, *, block_rows=None):
    """sigmoid(x @ weight.T + bias), squeezed to (B,).

    x:      (B, D) any float dtype (kept native; upcast to f32 inside the kernel)
    weight: (1, D) nn.Linear layout (out_features, in_features)
    bias:   (1,)
    """
    x = jnp.asarray(x)
    B, D = x.shape
    w = jnp.asarray(weight, jnp.float32).reshape(1, D)
    b = jnp.asarray(bias, jnp.float32).reshape(1)

    # Fold consecutive logical rows into lanes when D is narrow and B divides evenly.
    # The reshape below is a pure metadata change on a contiguous row-major array.
    fold = 1
    if 0 < D < 128:
        for lanes in (512, 256, 128):
            if lanes % D == 0 and B % (lanes // D) == 0:
                fold = lanes // D
                break
    # TODO(synk): ragged B with D < 128 falls back to the unfolded path; a tail-split
    # (folded main call + tiny remainder) would keep lane density without a pad copy.
    bf = B // fold
    dw = fold * D
    x_v = x.reshape(bf, dw)                 # free bitcast, no HBM copy
    w_v = jnp.tile(w, (1, fold))            # (1, dw), tiny

    itemsize = jnp.dtype(x.dtype).itemsize
    out_dtype = x.dtype
    out_itemsize = jnp.dtype(out_dtype).itemsize
    # Sublane granularity: 8 rows for 32-bit, 16 for 16-bit, 32 for 8-bit dtypes.
    gran = max(8, 32 // itemsize)

    if block_rows is None:
        # Bytes-based sizing, lane-padding aware: every VMEM row of the input costs
        # lane_pad(dw)*itemsize and the narrow output row still pads to 128 lanes.
        bytes_per_row = _lane_pad(dw) * itemsize + _lane_pad(fold) * out_itemsize
        target_bytes = 8 * 1024 * 1024      # per (input+output) buffer pair; x2 for pipelining
        block_rows = max(1, target_bytes // bytes_per_row)
    # Keep at least two grid blocks when there is enough work (v7x megacore sharding).
    block_rows = min(block_rows, _round_up(pl.cdiv(bf, 2), gran))
    block_rows = max(gran, (block_rows // gran) * gran)
    if block_rows >= bf:
        block_rows = bf                      # single full-extent block

    grid = (pl.cdiv(bf, block_rows),)        # ragged last block handled by masked stores

    # TODO(synk): if a single (block_rows, dw) slab ever exceeds the VMEM budget (huge D),
    # add a K-tiling grid axis ('arbitrary', last) with a (block_rows, fold) accumulator.
    x_tile = block_rows * _lane_pad(dw) * itemsize
    o_tile = block_rows * _lane_pad(fold) * out_itemsize
    vmem_needed = 2 * (x_tile + o_tile) + 2 * _lane_pad(dw) * 4 + (4 << 20)
    vmem_limit = int(min(max(vmem_needed, 16 << 20), 30 << 20))

    kernel = functools.partial(_para_sigmoid_kernel, fold=fold, feat=D)

    out = pl.pallas_call(
        kernel,
        out_shape=jax.ShapeDtypeStruct((bf, fold), out_dtype),
        grid_spec=pltpu.PrefetchScalarGridSpec(
            num_scalar_prefetch=0,
            grid=grid,
            in_specs=[
                pl.BlockSpec((block_rows, dw), lambda i: (i, 0)),     # x batch tile
                pl.BlockSpec((1, dw), lambda i: (0, 0)),              # weight row (resident)
                pl.BlockSpec(memory_space=pltpu.MemorySpace.SMEM),    # bias scalar
            ],
            out_specs=pl.BlockSpec((block_rows, fold), lambda i: (i, 0)),
        ),
        compiler_params=pltpu.CompilerParams(
            dimension_semantics=("parallel",),
            vmem_limit_bytes=vmem_limit,
        ),
    )(x_v, w_v, b)

    # (bf, fold) row-major is exactly logical row order -> free reshape back to (B,).
    return out.reshape(B)


if __name__ == "__main__":
    input_dim = 32

    key = jax.random.PRNGKey(0)
    kx, kw, kb, kx2, kx3 = jax.random.split(key, 5)

    # nn.Linear default init: U(-1/sqrt(D), 1/sqrt(D))
    bound = float(input_dim) ** -0.5
    weight = jax.random.uniform(kw, (1, input_dim), jnp.float32, -bound, bound)
    bias = jax.random.uniform(kb, (1,), jnp.float32, -bound, bound)

    def ref(xv):
        z = jnp.sum(xv.astype(jnp.float32) * weight, axis=-1) + bias[0]
        return 1.0 / (1.0 + jnp.exp(-z))

    # Small batch consistent with the module's forward (folded path, single block).
    x_small = jax.random.normal(kx, (8, input_dim), jnp.float32)
    y_small = jax.block_until_ready(para_sigmoid(x_small, weight, bias))
    assert y_small.shape == (8,)
    assert jnp.allclose(y_small, ref(x_small), atol=1e-5, rtol=1e-5)

    # Multi-block + ragged last block (no jnp.pad), folded path (300 % 4 == 0).
    x_big = jax.random.normal(kx2, (300, input_dim), jnp.float32)
    y_big = jax.block_until_ready(para_sigmoid(x_big, weight, bias))
    assert y_big.shape == (300,)
    assert jnp.allclose(y_big, ref(x_big), atol=1e-5, rtol=1e-5)

    # bf16 input streamed natively (no wrapper f32 cast), f32 accumulate in-kernel.
    x_bf16 = x_big.astype(jnp.bfloat16)
    y_bf16 = jax.block_until_ready(para_sigmoid(x_bf16, weight, bias))
    assert y_bf16.shape == (300,)
    assert jnp.allclose(y_bf16.astype(jnp.float32), ref(x_bf16), atol=2e-2)

    # Batch not divisible by any fold factor -> unfolded fallback path.
    x_odd = jax.random.normal(kx3, (5, input_dim), jnp.float32)
    y_odd = jax.block_until_ready(para_sigmoid(x_odd, weight, bias))
    assert y_odd.shape == (5,)
    assert jnp.allclose(y_odd, ref(x_odd), atol=1e-5, rtol=1e-5)

    print("KERNEL_OK")
</pallas_src>

<mosaic_0001>
module attributes {stable_mosaic.version = 11 : i64} {
  func.func @_para_sigmoid_kernel(%arg0: i32, %arg1: memref<1x256xf32, #tpu.memory_space<vmem>>, %arg2: memref<1x256xf32, #tpu.memory_space<vmem>>, %arg3: memref<1xf32, #tpu.memory_space<smem>>, %arg4: memref<1x8xf32, #tpu.memory_space<vmem>>) attributes {dimension_semantics = [#tpu.dimension_semantics<parallel>], iteration_bounds = array<i64: 1>, scalar_prefetch = 0 : i64, scratch_operands = 0 : i64, tpu.core_type = #tpu.core_type<tc>, window_params = [{transform_indices = @transform_0, window_bounds = array<i64: 1, 256>}, {pipeline_mode = #tpu.pipeline_mode<synchronous>, transform_indices = @transform_1, window_bounds = array<i64: 1, 256>}, {transform_indices = @transform_2, window_bounds = array<i64: 1>}, {transform_indices = @transform_3, window_bounds = array<i64: 1, 8>}]} {
    %c0 = arith.constant 0 : index
    %c0_0 = arith.constant 0 : index
    %0 = vector.load %arg1[%c0, %c0_0] : memref<1x256xf32, #tpu.memory_space<vmem>>, vector<1x256xf32>
    %c0_1 = arith.constant 0 : index
    %c0_2 = arith.constant 0 : index
    %1 = vector.load %arg2[%c0_1, %c0_2] : memref<1x256xf32, #tpu.memory_space<vmem>>, vector<1x256xf32>
    %2 = arith.mulf %0, %1 : vector<1x256xf32>
    %3 = vector.extract_strided_slice %2 {offsets = [0, 0], sizes = [1, 32], strides = [1, 1]} : vector<1x256xf32> to vector<1x32xf32>
    %cst = arith.constant dense<0.000000e+00> : vector<1xf32>
    %4 = vector.multi_reduction <add>, %3, %cst [1] : vector<1x32xf32> to vector<1xf32>
    %5 = vector.shape_cast %4 : vector<1xf32> to vector<1x1xf32>
    %6 = vector.extract_strided_slice %2 {offsets = [0, 32], sizes = [1, 32], strides = [1, 1]} : vector<1x256xf32> to vector<1x32xf32>
    %cst_3 = arith.constant dense<0.000000e+00> : vector<1xf32>
    %7 = vector.multi_reduction <add>, %6, %cst_3 [1] : vector<1x32xf32> to vector<1xf32>
    %8 = vector.shape_cast %7 : vector<1xf32> to vector<1x1xf32>
    %9 = vector.extract_strided_slice %2 {offsets = [0, 64], sizes = [1, 32], strides = [1, 1]} : vector<1x256xf32> to vector<1x32xf32>
    %cst_4 = arith.constant dense<0.000000e+00> : vector<1xf32>
    %10 = vector.multi_reduction <add>, %9, %cst_4 [1] : vector<1x32xf32> to vector<1xf32>
    %11 = vector.shape_cast %10 : vector<1xf32> to vector<1x1xf32>
    %12 = vector.extract_strided_slice %2 {offsets = [0, 96], sizes = [1, 32], strides = [1, 1]} : vector<1x256xf32> to vector<1x32xf32>
    %cst_5 = arith.constant dense<0.000000e+00> : vector<1xf32>
    %13 = vector.multi_reduction <add>, %12, %cst_5 [1] : vector<1x32xf32> to vector<1xf32>
    %14 = vector.shape_cast %13 : vector<1xf32> to vector<1x1xf32>
    %15 = vector.extract_strided_slice %2 {offsets = [0, 128], sizes = [1, 32], strides = [1, 1]} : vector<1x256xf32> to vector<1x32xf32>
    %cst_6 = arith.constant dense<0.000000e+00> : vector<1xf32>
    %16 = vector.multi_reduction <add>, %15, %cst_6 [1] : vector<1x32xf32> to vector<1xf32>
    %17 = vector.shape_cast %16 : vector<1xf32> to vector<1x1xf32>
    %18 = vector.extract_strided_slice %2 {offsets = [0, 160], sizes = [1, 32], strides = [1, 1]} : vector<1x256xf32> to vector<1x32xf32>
    %cst_7 = arith.constant dense<0.000000e+00> : vector<1xf32>
    %19 = vector.multi_reduction <add>, %18, %cst_7 [1] : vector<1x32xf32> to vector<1xf32>
    %20 = vector.shape_cast %19 : vector<1xf32> to vector<1x1xf32>
    %21 = vector.extract_strided_slice %2 {offsets = [0, 192], sizes = [1, 32], strides = [1, 1]} : vector<1x256xf32> to vector<1x32xf32>
    %cst_8 = arith.constant dense<0.000000e+00> : vector<1xf32>
    %22 = vector.multi_reduction <add>, %21, %cst_8 [1] : vector<1x32xf32> to vector<1xf32>
    %23 = vector.shape_cast %22 : vector<1xf32> to vector<1x1xf32>
    %24 = vector.extract_strided_slice %2 {offsets = [0, 224], sizes = [1, 32], strides = [1, 1]} : vector<1x256xf32> to vector<1x32xf32>
    %cst_9 = arith.constant dense<0.000000e+00> : vector<1xf32>
    %25 = vector.multi_reduction <add>, %24, %cst_9 [1] : vector<1x32xf32> to vector<1xf32>
    %26 = vector.shape_cast %25 : vector<1xf32> to vector<1x1xf32>
    %27 = tpu.concatenate %5, %8, %11, %14, %17, %20, %23, %26 in 1 : vector<1x1xf32>, vector<1x1xf32>, vector<1x1xf32>, vector<1x1xf32>, vector<1x1xf32>, vector<1x1xf32>, vector<1x1xf32>, vector<1x1xf32> -> vector<1x8xf32>
    %c0_10 = arith.constant 0 : index
    %28 = memref.load %arg3[%c0_10] : memref<1xf32, #tpu.memory_space<smem>>
    %29 = vector.broadcast %28 : f32 to vector<1x8xf32>
    %30 = arith.addf %27, %29 : vector<1x8xf32>
    %cst_11 = arith.constant 0.000000e+00 : f32
    %31 = vector.broadcast %cst_11 : f32 to vector<1x8xf32>
    %32 = arith.subf %31, %30 : vector<1x8xf32>
    %33 = math.exp %32 : vector<1x8xf32>
    %cst_12 = arith.constant 1.000000e+00 : f32
    %34 = vector.broadcast %cst_12 : f32 to vector<1x8xf32>
    %35 = arith.addf %34, %33 : vector<1x8xf32>
    %cst_13 = arith.constant 1.000000e+00 : f32
    %36 = vector.broadcast %cst_13 : f32 to vector<1x8xf32>
    %37 = arith.divf %36, %35 : vector<1x8xf32>
    %c0_14 = arith.constant 0 : index
    %c0_15 = arith.constant 0 : index
    %38 = vector.load %arg4[%c0_14, %c0_15] : memref<1x8xf32, #tpu.memory_space<vmem>>, vector<1x8xf32>
    tpu.vector_store %arg4[%c0_14, %c0_15], %37 {strides = array<i32>} : memref<1x8xf32, #tpu.memory_space<vmem>>, vector<1x8xf32>,
    return
  }
  func.func @transform_0(%arg0: i32) -> (i32, i32) {
    %c0_i32 = arith.constant 0 : i32
    %c0_i32_0 = arith.constant 0 : i32
    return %arg0, %c0_i32 : i32, i32
  }
  func.func @transform_1(%arg0: i32) -> (i32, i32) {
    %c0_i32 = arith.constant 0 : i32
    %c0_i32_0 = arith.constant 0 : i32
    %c0_i32_1 = arith.constant 0 : i32
    return %c0_i32, %c0_i32_0 : i32, i32
  }
  func.func @transform_2(%arg0: i32) -> i32 {
    %c0_i32 = arith.constant 0 : i32
    %c0_i32_0 = arith.constant 0 : i32
    return %c0_i32 : i32
  }
  func.func @transform_3(%arg0: i32) -> (i32, i32) {
    %c0_i32 = arith.constant 0 : i32
    %c0_i32_0 = arith.constant 0 : i32
    return %arg0, %c0_i32 : i32, i32
  }
}

</mosaic_0001>

<llo_original>
// kernel: tpu_custom_call.1
$region0: #{tpu_custom_call.1}
  #allocation0 [shape = 'u32[]', space=smem, size = 0x4, offset = 0x4, fixed_abs, tag = 'smem constant byte address 0x4 - core index']
  #allocation1 [shape = 'u32[144,128]{1,0:T(1,128)}', space=vmem, size = 0x12000, scoped, tag = 'internal scratch']
  #allocation2 [shape = 'f32[1]{0:T(128)S(6)}', space=smem, size = 0x200, scoped, tag = 'scoped memory for tpu_custom_call.1']
  %s0 = inlined_call_operand.vmem [shape: f32[1,256], index: 0, kind: input, shape index: {}]
  %s1 = inlined_call_operand.hbm [shape: f32[1,256], index: 1, kind: input, shape index: {}]
  %s2 = inlined_call_operand.<no memory space> [shape: f32[1], index: 2, kind: input, shape index: {}]
  %s3 = inlined_call_operand.hbm [shape: f32[1,8], index: 3, kind: output, shape index: {}]
  %s4 = sld [smem:[#allocation0]]
  $region26: #{tpu_custom_call.1} parent=0
    _
  %s6 = ssub.s32 1, %s4
  %s7 = scalar_select 0, %s6, %s4
  %8 = sst [smem:[#allocation2]] %s2
  $region1: #{tpu_custom_call.1} parent=0
    #allocation3 [shape = 'u8[1024]{0}', space=vmem, size = 0x400, scoped, tag = 'input window, operand 1, single buffered']
    #allocation4 [shape = 's32[1]{0}', space=sflag, size = 0x4, scoped, tag = 'scoped memory for tpu_custom_call.1']
    #allocation5 [shape = 's32[1]{0}', space=sflag, size = 0x4, scoped, tag = 'scoped memory for tpu_custom_call.1']
    #allocation6 [shape = 'u8[512]{0}', space=vmem, size = 0x400, scoped, tag = 'output window, operand 0, single buffered']
    %9 = vsyncpa [#allocation4], 0
    %10 = vsyncpa [#allocation5], 0
    // Predicated region
    $region2: #{tpu_custom_call.1} parent=1 // pred_check
      _
    $region3: #{tpu_custom_call.1} parent=1 // pred_check_branch
      %12 = sbr.rel (0) target = $region5
    $region4: #{tpu_custom_call.1} parent=1 // pred_region
      _
    $region5: #{tpu_custom_call.1} parent=1 // pred_fallthru
      _
    // Predicated region
    $region6: #{tpu_custom_call.1} parent=1 // pred_check
      _
    $region7: #{tpu_custom_call.1} parent=1 // pred_check_branch
      %14 = sbr.rel (0) target = $region9
    $region8: #{tpu_custom_call.1} parent=1 // pred_region
      %s16 = ssub.s32 32, 32
      %17 = vsyncadd [#allocation4], %s16
      %s19 = sshll.u32 [#allocation3], 4
      %s20 = int_to_ptr.vmem [resolvable:$true] %s19
      %22 = dma.hbm_to_vmem [thread:$0]  %s1, 32, %s20, [#allocation4]
    $region9: #{tpu_custom_call.1} parent=1 // pred_fallthru
      _
    // Predicated region
    $region10: #{tpu_custom_call.1} parent=1 // pred_check
      _
    $region11: #{tpu_custom_call.1} parent=1 // pred_check_branch
      %24 = sbr.rel (0) target = $region13
    $region12: #{tpu_custom_call.1} parent=1 // pred_region
      _
    $region13: #{tpu_custom_call.1} parent=1 // pred_fallthru
      _
    // Predicated region
    $region14: #{tpu_custom_call.1} parent=1 // pred_check
      _
    $region15: #{tpu_custom_call.1} parent=1 // pred_check_branch
      %26 = sbr.rel (0) target = $region17
    $region16: #{tpu_custom_call.1} parent=1 // pred_region
      %27 = dma.done [#allocation4], 32
    $region17: #{tpu_custom_call.1} parent=1 // pred_fallthru
      _
    %v28 = vld [vmem:[%s0] sm:$0x3]
    %v29 = vld [vmem:[#allocation3] sm:$0x3]
    %v30 = vmul.f32 %v28, %v29
    %vm31 = vcmask 253952
    %v32 = vsel %vm31, %v30, 0.0
    %33 = vadd.xlane.f32.xlu0 %v32
    %v34 = vpop.xlane.xlu0 %33
    %v36 = vlaneseq
    %v37 = vshrl.u32 %v36, 7
    %v38 = vsub.s32 0, %v37
    %v39 = vrot.slane %v30, %v38
    %40 = vrot.lane.b32.xlu0 %v39, 96
    %v41 = vpop.permute.xlu0 %40
    %v43 = vsel %vm31, %v41, 0.0
    %44 = vadd.xlane.f32.xlu0 %v43
    %v45 = vpop.xlane.xlu0 %44
    %46 = vrot.lane.b32.xlu0 %v39, 64
    %v47 = vpop.permute.xlu0 %46
    %v49 = vsel %vm31, %v47, 0.0
    %50 = vadd.xlane.f32.xlu0 %v49
    %v51 = vpop.xlane.xlu0 %50
    %52 = vrot.lane.b32.xlu0 %v39, 32
    %v53 = vpop.permute.xlu0 %52
    %v55 = vsel %vm31, %v53, 0.0
    %56 = vadd.xlane.f32.xlu0 %v55
    %v57 = vpop.xlane.xlu0 %56
    %v58 = vlaneseq
    %v59 = vshrl.u32 %v58, 7
    %v60 = vsub.s32 1, %v59
    %v61 = vrot.slane %v30, %v60
    %v63 = vsel %vm31, %v61, 0.0
    %64 = vadd.xlane.f32.xlu0 %v63
    %v65 = vpop.xlane.xlu0 %64
    %66 = vrot.lane.b32.xlu0 %v61, 96
    %v67 = vpop.permute.xlu0 %66
    %v69 = vsel %vm31, %v67, 0.0
    %70 = vadd.xlane.f32.xlu0 %v69
    %v71 = vpop.xlane.xlu0 %70
    %72 = vrot.lane.b32.xlu0 %v61, 64
    %v73 = vpop.permute.xlu0 %72
    %v75 = vsel %vm31, %v73, 0.0
    %76 = vadd.xlane.f32.xlu0 %v75
    %v77 = vpop.xlane.xlu0 %76
    %78 = vrot.lane.b32.xlu0 %v61, 32
    %v79 = vpop.permute.xlu0 %78
    %v81 = vsel %vm31, %v79, 0.0
    %82 = vadd.xlane.f32.xlu0 %v81
    %v83 = vpop.xlane.xlu0 %82
    %vm84 = vcmask 7168
    %v85 = vsel %vm84, %v34, %v45
    %vm86 = vcmask 15360
    %v87 = vsel %vm86, %v85, %v51
    %vm88 = vcmask 23552
    %v89 = vsel %vm88, %v87, %v57
    %vm90 = vcmask 31744
    %v91 = vsel %vm90, %v89, %v65
    %vm92 = vcmask 39936
    %v93 = vsel %vm92, %v91, %v71
    %vm94 = vcmask 48128
    %v95 = vsel %vm94, %v93, %v77
    %vm96 = vcmask 56320
    %v97 = vsel %vm96, %v95, %v83
    %s98 = sld [smem:[#allocation2]]
    %v99 = vstv %s98
    %v100 = vadd.f32 %v97, %v99
    %v101 = vsub.f32 0.0, %v100
    %v102 = vmul.f32 %v101, 1.442695
    %v103 = vpow.pop %v102
    %v104 = vadd.f32 %v103, 1.0
    %v105 = vrcp.pop %v104
    %v106 = vmul.f32 1.0, %v105
    %vm107 = vcmask 57344
    %108 = vst.msk [vmem:[#allocation6] sm:$0x1] %vm107, %v106
    // Predicated region
    $region18: #{tpu_custom_call.1} parent=1 // pred_check
      _
    $region19: #{tpu_custom_call.1} parent=1 // pred_check_branch
      %110 = sbr.rel (0) target = $region21
    $region20: #{tpu_custom_call.1} parent=1 // pred_region
      %s112 = ssub.s32 16, 16
      %113 = vsyncadd [#allocation5], %s112
      %s115 = sshll.u32 [#allocation6], 4
      %s116 = int_to_ptr.vmem [resolvable:$true] %s115
      %118 = dma.vmem_to_hbm [thread:$0]  %s116, 16, %s3, [#allocation5]
    $region21: #{tpu_custom_call.1} parent=1 // pred_fallthru
      _
    // Predicated region
    $region22: #{tpu_custom_call.1} parent=1 // pred_check
      _
    $region23: #{tpu_custom_call.1} parent=1 // pred_check_branch
      %120 = sbr.rel (0) target = $region25
    $region24: #{tpu_custom_call.1} parent=1 // pred_region
      %121 = dma.done [#allocation5], 16
    $region25: #{tpu_custom_call.1} parent=1 // pred_fallthru
      _
    %122 = vsyncpa [#allocation4], 1
    %123 = vsyncpa [#allocation5], 1

</llo_original>
